<compile_context>
chip_gen: v5e
topology: v5e:2x2
jax: 0.10.0
libtpu: 0.0.40
codegen_flags: <defaults>
</compile_context>

<pallas_src>
import functools
import math

import jax
import jax.numpy as jnp
from jax.experimental import pallas as pl
from jax.experimental.pallas import tpu as pltpu


def _conv_bn_lrelu_kernel(x_ref, w_ref, b_ref, o_ref, *, kh, wp, stride, row_block):
    """One grid step = one batch image (VMEM-resident across its row-tiles) x one tile
    of output rows, written as a single lane-dense slab.

    x_ref: (1, Lq, KW*Cin)     flattened padded image, KW taps pre-folded into lanes
    w_ref: (KH, KW*Cin, Coutp) BN-scale-folded weights (kh-taps-major)
    b_ref: (1, Coutp) f32      folded BN bias
    o_ref: (1, toh*Wp, Coutp)  output slab, row-major over (out_row, padded_col)
    """
    coutp = o_ref.shape[-1]
    base = pl.multiple_of(pl.program_id(1) * row_block, 8)

    # KH MXU dots with contraction depth KW*Cin; the first dot initializes the f32
    # accumulator, so it is only read-modified-written KH-1 times.
    acc = jnp.dot(x_ref[0, pl.ds(base, row_block), :], w_ref[0],
                  preferred_element_type=jnp.float32)
    for i in range(1, kh):
        acc += jnp.dot(x_ref[0, pl.ds(base + i * wp, row_block), :], w_ref[i],
                       preferred_element_type=jnp.float32)

    if stride > 1:
        # Keep only the rows that correspond to real output pixels before the epilogue.
        # TODO(synk): for stride>1 the MXU still computes the skipped rows; a strided
        # per-output-row operand would avoid that extra work.
        acc = jax.lax.slice(acc, (0, 0), (acc.shape[0], coutp), (stride, 1))

    # Fused BN bias + LeakyReLU(0.1) on the output slab, single contiguous store.
    y = acc + b_ref[...]
    y = jnp.where(y >= 0, y, 0.1 * y)
    o_ref[0] = y.astype(o_ref.dtype)


def _num_tensorcores():
    """Best-effort TensorCore count per chip (v7x has 2; v5e/v6e have 1)."""
    try:
        dev = jax.devices()[0]
        if dev.platform != "tpu":
            return 1
        return max(1, int(getattr(dev, "num_cores", 1)))
    except Exception:
        return 1


def _pick_toh(oh, ow, wp, n_batch, *, target_rows=512, min_steps=None):
    """Output-row tile height: biggest tile with ~target_rows output pixels.  Only shrink
    to create extra grid steps when the part actually has multiple TensorCores (v5e/v6e
    are single-TC: smaller tiles only add per-step overhead).  toh is rounded so
    toh*Wp % 8 == 0 (clean output blocks); OH need NOT be divisible by toh (the padded
    last tile is cropped in the wrapper)."""
    if min_steps is None:
        cores = _num_tensorcores()
        min_steps = 1 if cores <= 1 else 2 * cores
    m = 8 // math.gcd(wp, 8)
    toh = max(1, min(oh, target_rows // max(ow, 1)))
    toh = max(m, (toh // m) * m)
    while n_batch * pl.cdiv(oh, toh) < min_steps and toh > m:
        toh = max(m, toh - m)
    return toh


def _vmem_block_bytes(shape, dtype):
    """Conservative VMEM footprint of one buffer of `shape` after (sublane,128) tiling."""
    itemsize = jnp.dtype(dtype).itemsize
    dims = list(shape)
    if len(dims) >= 1:
        dims[-1] = pl.cdiv(dims[-1], 128) * 128
    if len(dims) >= 2:
        sub = 8 * max(1, 4 // itemsize)
        dims[-2] = pl.cdiv(dims[-2], sub) * sub
    n = 1
    for d in dims:
        n *= d
    return n * itemsize


def conv_block_forward(x_nchw, weight, gamma, beta, running_mean, running_var, *,
                       stride=1, padding=1, eps=1e-5,
                       compute_dtype=jnp.bfloat16, target_tile_rows=512):
    """ConvBlock forward (inference BN). x_nchw: (N, Cin, H, W); weight: (Cout, Cin, KH, KW)."""
    N, Cin, H, W = x_nchw.shape
    Cout, _, KH, KW = weight.shape
    OH = (H + 2 * padding - KH) // stride + 1
    OW = (W + 2 * padding - KW) // stride + 1
    Hp, Wp = H + 2 * padding, W + 2 * padding
    Coutp = pl.cdiv(Cout, 128) * 128                     # lane-dense (unmasked) stores

    # ---- Fold BN (inference) into weights/bias, in f32, cast ONCE to compute dtype.
    scale = (gamma / jnp.sqrt(running_var + eps)).astype(jnp.float32)   # (Cout,)
    bias = (beta - running_mean * scale).astype(jnp.float32)            # (Cout,)
    w_f = weight.astype(jnp.float32) * scale[:, None, None, None]       # conv is linear in w
    # (Cout, Cin, KH, KW) -> (KH, KW*Cin, Coutp): kh-taps major; K index is (j, ci).
    w_f = jnp.transpose(w_f, (2, 3, 1, 0)).reshape(KH, KW * Cin, Cout)
    w_fold = jnp.pad(w_f, ((0, 0), (0, 0), (0, Coutp - Cout))).astype(compute_dtype)
    bias_p = jnp.pad(bias, (0, Coutp - Cout)).reshape(1, Coutp)

    # ---- Tiling.
    toh = _pick_toh(OH, OW, Wp, N, target_rows=target_tile_rows)
    T = pl.cdiv(OH, toh)                     # partial last tile computed then cropped
    row_block = stride * toh * Wp            # accumulator rows per tile
    out_rows = T * toh * Wp
    Lq = T * row_block + (KH - 1) * Wp       # rows of the KW-folded image the kernel reads
    Lflat = Lq + (KW - 1)                    # underlying flattened rows needed

    # ---- NCHW -> NHWC, spatial zero-pad, flatten (H, W); all in compute dtype so the
    # wrapper passes move half the bytes.  Then pre-fold the KW taps into the lane dim:
    #   xw[n, q, j*Cin + c] = xflat[n, q + j, c]
    # raising the MXU contraction depth from Cin to KW*Cin and cutting the in-kernel
    # dots from KH*KW to KH.  This replicates only the small Cin-side image KWx in HBM
    # and costs zero extra VMEM (the lane dim is padded to 128 regardless).
    x = jnp.transpose(x_nchw.astype(compute_dtype), (0, 2, 3, 1))        # (N, H, W, Cin)
    xp = jnp.pad(x, ((0, 0), (padding, padding), (padding, padding), (0, 0)))
    xflat = xp.reshape(N, Hp * Wp, Cin)
    if Lflat > Hp * Wp:
        xflat = jnp.pad(xflat, ((0, 0), (0, Lflat - Hp * Wp), (0, 0)))
    xw = jnp.concatenate([xflat[:, j:j + Lq, :] for j in range(KW)], axis=-1)  # (N, Lq, KW*Cin)

    # ---- Explicit VMEM budget (v5e default scoped limit is only 16 MiB).
    x_block = _vmem_block_bytes((1, Lq, KW * Cin), compute_dtype)
    x_bufs = 1 if 2 * x_block > (24 << 20) else 2   # single-buffer the big whole-image block
    need = (x_block * x_bufs
            + 2 * _vmem_block_bytes((KH, KW * Cin, Coutp), compute_dtype)
            + 2 * _vmem_block_bytes((1, Coutp), jnp.float32)
            + 2 * _vmem_block_bytes((1, toh * Wp, Coutp), compute_dtype)
            + 2 * _vmem_block_bytes((row_block, Coutp), jnp.float32))    # f32 accumulator
    vmem_limit = int(min(max(int(need * 1.5) + (4 << 20), 32 << 20), 100 << 20))
    # TODO(synk): for very large images the whole-image residency itself exceeds v7x's
    # 64 MiB VMEM; tile x along H with a (toh-1)*stride+KH halo window in that regime.

    x_spec_kwargs = {}
    if x_bufs == 1:
        # Its block index only changes with n, so double-buffering is mostly wasted VMEM.
        x_spec_kwargs["pipeline_mode"] = pl.Buffered(1)
    in_specs = [
        pl.BlockSpec((1, Lq, KW * Cin), lambda n, t: (n, 0, 0), **x_spec_kwargs),
        pl.BlockSpec((KH, KW * Cin, Coutp), lambda n, t: (0, 0, 0)),
        pl.BlockSpec((1, Coutp), lambda n, t: (0, 0)),
    ]
    out_spec = pl.BlockSpec((1, toh * Wp, Coutp), lambda n, t: (n, t, 0))

    kernel = functools.partial(_conv_bn_lrelu_kernel,
                               kh=KH, wp=Wp, stride=stride, row_block=row_block)
    itemsize = jnp.dtype(compute_dtype).itemsize
    cost = pl.CostEstimate(
        flops=2 * N * OH * OW * Cout * Cin * KH * KW,
        transcendentals=0,
        bytes_accessed=int(xw.size * itemsize + w_fold.size * itemsize
                           + N * out_rows * Coutp * itemsize))

    out_flat = pl.pallas_call(
        kernel,
        out_shape=jax.ShapeDtypeStruct((N, out_rows, Coutp), compute_dtype),
        grid_spec=pltpu.PrefetchScalarGridSpec(
            num_scalar_prefetch=0,
            grid=(N, T),
            in_specs=in_specs,
            out_specs=out_spec,
        ),
        compiler_params=pltpu.CompilerParams(
            dimension_semantics=("parallel", "parallel"),
            vmem_limit_bytes=vmem_limit),
        cost_estimate=cost,
    )(xw, w_fold, bias_p)

    # Crop (cheap, still compute dtype) BEFORE the layout transpose; cast last.
    out = out_flat.reshape(N, T * toh, Wp, Coutp)[:, :OH, :OW, :Cout]
    out = jnp.transpose(out, (0, 3, 1, 2)).astype(x_nchw.dtype)          # back to NCHW
    # TODO(synk): return NHWC directly if the surrounding model is NHWC (drops one pass).
    return out


def _reference(x_nchw, weight, gamma, beta, running_mean, running_var,
               *, stride=1, padding=1, eps=1e-5):
    y = jax.lax.conv_general_dilated(
        x_nchw, weight, window_strides=(stride, stride),
        padding=[(padding, padding), (padding, padding)],
        dimension_numbers=("NCHW", "OIHW", "NCHW"))
    scale = (gamma / jnp.sqrt(running_var + eps)).reshape(1, -1, 1, 1)
    bias = (beta - running_mean * gamma / jnp.sqrt(running_var + eps)).reshape(1, -1, 1, 1)
    y = y * scale + bias
    return jnp.where(y >= 0, y, 0.1 * y)


if __name__ == "__main__":
    key = jax.random.PRNGKey(0)
    k_x, k_w, k_g, k_b, k_m, k_v = jax.random.split(key, 6)

    # Module config: ConvBlock(in_channels=4, out_channels=8, kernel_size=3, stride=1, padding=1)
    N, Cin, H, W = 2, 4, 16, 16
    Cout, KH, KW = 8, 3, 3

    x = jax.random.normal(k_x, (N, Cin, H, W), dtype=jnp.float32)
    weight = jax.random.normal(k_w, (Cout, Cin, KH, KW), dtype=jnp.float32) * 0.1
    gamma = 1.0 + 0.1 * jax.random.normal(k_g, (Cout,), dtype=jnp.float32)
    beta = 0.1 * jax.random.normal(k_b, (Cout,), dtype=jnp.float32)
    running_mean = 0.1 * jax.random.normal(k_m, (Cout,), dtype=jnp.float32)
    running_var = jnp.abs(1.0 + 0.1 * jax.random.normal(k_v, (Cout,), dtype=jnp.float32))

    ref = _reference(x, weight, gamma, beta, running_mean, running_var,
                     stride=1, padding=1)

    # Exact-mode check (f32 MXU operands + f32 stores): tight tolerance.
    out_f32 = conv_block_forward(x, weight, gamma, beta, running_mean, running_var,
                                 stride=1, padding=1, compute_dtype=jnp.float32)
    out_f32 = jax.block_until_ready(out_f32)
    assert out_f32.shape == (N, Cout, H, W), out_f32.shape
    assert jnp.allclose(out_f32, ref, atol=1e-4, rtol=1e-4), \
        float(jnp.max(jnp.abs(out_f32 - ref)))

    # Default fast path (bf16 MXU operands + bf16 store, f32 accumulation/epilogue).
    out_bf16 = conv_block_forward(x, weight, gamma, beta, running_mean, running_var,
                                  stride=1, padding=1)
    out_bf16 = jax.block_until_ready(out_bf16)
    assert out_bf16.shape == (N, Cout, H, W), out_bf16.shape
    assert jnp.allclose(out_bf16, ref, atol=5e-2, rtol=5e-2), \
        float(jnp.max(jnp.abs(out_bf16 - ref)))

    print("KERNEL_OK")
</pallas_src>

<mosaic_0001>
module attributes {stable_mosaic.version = 11 : i64} {
  func.func @_conv_bn_lrelu_kernel(%arg0: i32, %arg1: i32, %arg2: memref<1x324x12xf32, #tpu.memory_space<vmem>>, %arg3: memref<3x12x128xf32, #tpu.memory_space<vmem>>, %arg4: memref<1x128xf32, #tpu.memory_space<vmem>>, %arg5: memref<1x288x128xf32, #tpu.memory_space<vmem>>) attributes {dimension_semantics = [#tpu.dimension_semantics<parallel>, #tpu.dimension_semantics<parallel>], iteration_bounds = array<i64: 2, 1>, scalar_prefetch = 0 : i64, scratch_operands = 0 : i64, tpu.core_type = #tpu.core_type<tc>, window_params = [{transform_indices = @transform_0, window_bounds = array<i64: 1, 324, 12>}, {pipeline_mode = #tpu.pipeline_mode<synchronous>, transform_indices = @transform_1, window_bounds = array<i64: 3, 12, 128>}, {pipeline_mode = #tpu.pipeline_mode<synchronous>, transform_indices = @transform_2, window_bounds = array<i64: 1, 128>}, {transform_indices = @transform_3, window_bounds = array<i64: 1, 288, 128>}]} {
    %c288_i32 = arith.constant 288 : i32
    %0 = arith.muli %arg1, %c288_i32 : i32
    %1 = tpu.assume_multiple %0, 8 : i32
    %c0 = arith.constant 0 : index
    %2 = arith.index_cast %1 : i32 to index
    %c0_0 = arith.constant 0 : index
    %3 = vector.load %arg2[%c0, %2, %c0_0] : memref<1x324x12xf32, #tpu.memory_space<vmem>>, vector<1x288x12xf32>
    %4 = vector.shape_cast %3 : vector<1x288x12xf32> to vector<288x12xf32>
    %c0_1 = arith.constant 0 : index
    %c0_2 = arith.constant 0 : index
    %c0_3 = arith.constant 0 : index
    %5 = vector.load %arg3[%c0_1, %c0_2, %c0_3] : memref<3x12x128xf32, #tpu.memory_space<vmem>>, vector<1x12x128xf32>
    %6 = vector.shape_cast %5 : vector<1x12x128xf32> to vector<12x128xf32>
    %cst = arith.constant dense<0.000000e+00> : vector<288x128xf32>
    %7 = tpu.matmul %4, %6, %cst {dimension_numbers = #tpu.dot_dimension_numbers<[1], [0], [0], [1], [0, 0, 1, 1], [], []>} : vector<288x12xf32>, vector<12x128xf32>, vector<288x128xf32> -> vector<288x128xf32>
    %c18_i32 = arith.constant 18 : i32
    %8 = arith.addi %1, %c18_i32 : i32
    %c0_4 = arith.constant 0 : index
    %9 = arith.index_cast %8 : i32 to index
    %c0_5 = arith.constant 0 : index
    %10 = vector.load %arg2[%c0_4, %9, %c0_5] : memref<1x324x12xf32, #tpu.memory_space<vmem>>, vector<1x288x12xf32>
    %11 = vector.shape_cast %10 : vector<1x288x12xf32> to vector<288x12xf32>
    %c1 = arith.constant 1 : index
    %c0_6 = arith.constant 0 : index
    %c0_7 = arith.constant 0 : index
    %12 = vector.load %arg3[%c1, %c0_6, %c0_7] : memref<3x12x128xf32, #tpu.memory_space<vmem>>, vector<1x12x128xf32>
    %13 = vector.shape_cast %12 : vector<1x12x128xf32> to vector<12x128xf32>
    %cst_8 = arith.constant dense<0.000000e+00> : vector<288x128xf32>
    %14 = tpu.matmul %11, %13, %cst_8 {dimension_numbers = #tpu.dot_dimension_numbers<[1], [0], [0], [1], [0, 0, 1, 1], [], []>} : vector<288x12xf32>, vector<12x128xf32>, vector<288x128xf32> -> vector<288x128xf32>
    %15 = arith.addf %7, %14 : vector<288x128xf32>
    %c36_i32 = arith.constant 36 : i32
    %16 = arith.addi %1, %c36_i32 : i32
    %c0_9 = arith.constant 0 : index
    %17 = arith.index_cast %16 : i32 to index
    %c0_10 = arith.constant 0 : index
    %18 = vector.load %arg2[%c0_9, %17, %c0_10] : memref<1x324x12xf32, #tpu.memory_space<vmem>>, vector<1x288x12xf32>
    %19 = vector.shape_cast %18 : vector<1x288x12xf32> to vector<288x12xf32>
    %c2 = arith.constant 2 : index
    %c0_11 = arith.constant 0 : index
    %c0_12 = arith.constant 0 : index
    %20 = vector.load %arg3[%c2, %c0_11, %c0_12] : memref<3x12x128xf32, #tpu.memory_space<vmem>>, vector<1x12x128xf32>
    %21 = vector.shape_cast %20 : vector<1x12x128xf32> to vector<12x128xf32>
    %cst_13 = arith.constant dense<0.000000e+00> : vector<288x128xf32>
    %22 = tpu.matmul %19, %21, %cst_13 {dimension_numbers = #tpu.dot_dimension_numbers<[1], [0], [0], [1], [0, 0, 1, 1], [], []>} : vector<288x12xf32>, vector<12x128xf32>, vector<288x128xf32> -> vector<288x128xf32>
    %23 = arith.addf %15, %22 : vector<288x128xf32>
    %c0_14 = arith.constant 0 : index
    %c0_15 = arith.constant 0 : index
    %24 = vector.load %arg4[%c0_14, %c0_15] : memref<1x128xf32, #tpu.memory_space<vmem>>, vector<1x128xf32>
    %25 = vector.broadcast %24 : vector<1x128xf32> to vector<288x128xf32>
    %26 = arith.addf %23, %25 : vector<288x128xf32>
    %cst_16 = arith.constant 0.000000e+00 : f32
    %27 = vector.broadcast %cst_16 : f32 to vector<288x128xf32>
    %28 = arith.cmpf oge, %26, %27 : vector<288x128xf32>
    %cst_17 = arith.constant 1.000000e-01 : f32
    %29 = vector.broadcast %cst_17 : f32 to vector<288x128xf32>
    %30 = arith.mulf %29, %26 : vector<288x128xf32>
    %31 = arith.select %28, %26, %30 : vector<288x128xi1>, vector<288x128xf32>
    %c0_18 = arith.constant 0 : index
    %c0_19 = arith.constant 0 : index
    %c0_20 = arith.constant 0 : index
    %32 = vector.load %arg5[%c0_18, %c0_19, %c0_20] : memref<1x288x128xf32, #tpu.memory_space<vmem>>, vector<1x288x128xf32>
    %33 = vector.shape_cast %32 : vector<1x288x128xf32> to vector<288x128xf32>
    %34 = vector.shape_cast %31 : vector<288x128xf32> to vector<1x288x128xf32>
    tpu.vector_store %arg5[%c0_18, %c0_19, %c0_20], %34 {strides = array<i32>} : memref<1x288x128xf32, #tpu.memory_space<vmem>>, vector<1x288x128xf32>,
    return
  }
  func.func @transform_0(%arg0: i32, %arg1: i32) -> (i32, i32, i32) {
    %c0_i32 = arith.constant 0 : i32
    %c0_i32_0 = arith.constant 0 : i32
    %c0_i32_1 = arith.constant 0 : i32
    return %arg0, %c0_i32, %c0_i32_0 : i32, i32, i32
  }
  func.func @transform_1(%arg0: i32, %arg1: i32) -> (i32, i32, i32) {
    %c0_i32 = arith.constant 0 : i32
    %c0_i32_0 = arith.constant 0 : i32
    %c0_i32_1 = arith.constant 0 : i32
    %c0_i32_2 = arith.constant 0 : i32
    return %c0_i32, %c0_i32_0, %c0_i32_1 : i32, i32, i32
  }
  func.func @transform_2(%arg0: i32, %arg1: i32) -> (i32, i32) {
    %c0_i32 = arith.constant 0 : i32
    %c0_i32_0 = arith.constant 0 : i32
    %c0_i32_1 = arith.constant 0 : i32
    return %c0_i32, %c0_i32_0 : i32, i32
  }
  func.func @transform_3(%arg0: i32, %arg1: i32) -> (i32, i32, i32) {
    %c0_i32 = arith.constant 0 : i32
    %c0_i32_0 = arith.constant 0 : i32
    return %arg0, %arg1, %c0_i32 : i32, i32, i32
  }
}

</mosaic_0001>

<llo_original>
// kernel: tpu_custom_call.1
$region0: #{tpu_custom_call.1}
  #allocation0 [shape = 'u32[]', space=smem, size = 0x4, offset = 0x4, fixed_abs, tag = 'smem constant byte address 0x4 - core index']
  #allocation1 [shape = 'u32[72,128]{1,0:T(1,128)}', space=vmem, size = 0x9000, scoped, tag = 'internal scratch']
  %s0 = inlined_call_operand.vmem [shape: f32[2,324,12], index: 0, kind: input, shape index: {}]
  %s1 = inlined_call_operand.vmem [shape: f32[3,12,128], index: 1, kind: input, shape index: {}]
  %s2 = inlined_call_operand.vmem [shape: f32[1,128], index: 2, kind: input, shape index: {}]
  %s3 = inlined_call_operand.hbm [shape: f32[2,288,128], index: 3, kind: output, shape index: {}]
  %s4 = sld [smem:[#allocation0]]
  $region45: #{tpu_custom_call.1} parent=0
    _
  %s6 = ssub.s32 1, %s4
  %s7 = scalar_select 0, %s6, %s4
  $region1: #{tpu_custom_call.1} parent=0
    #allocation2 [shape = 'u8[294912]{0}', space=vmem, size = 0x48000, scoped, tag = 'output window, operand 0']
    #allocation3 [shape = 's32[2]{0}', space=sflag, size = 0x8, scoped, tag = 'scoped memory for tpu_custom_call.1']
    %8 = vsyncpa [#allocation3], 0
    %s9 = scalar_lea.sflag [#allocation3], 1
    %10 = vsyncpa %s9, 0
    loop: start=0, step=1, limit=4
    $region2: #{tpu_custom_call.1} parent=1 // loop_pre_header
      _
    $region3: #{tpu_custom_call.1} parent=1 // loop_header
      %s12 = sphi 0, %s16
      %p13 = scmp.ge.s32.totalorder %s12, 4
      %s19 = sphi 0, %s31
      %s20 = sphi 0, %s27
      %s21 = sphi 0, %s19
      %s22 = sphi 0, %s20
      %s23 = sphi 0, %s21
      %s24 = sphi 0, %s22
      %s34 = sphi 0, %s36
      %s37 = sphi 0, %s34
      %s38 = sphi 0, %s37
      %s54 = sphi 0, %s38
      %s58 = sphi 0, %s58
      %s60 = sphi 0, %s58
      %s61 = sphi 0, %s60
      %s75 = sphi 0, %s61
      %s79 = sphi 0, %s79
      %s81 = sphi 0, %s79
      %s82 = sphi 0, %s81
      %s96 = sphi 0, %s82
      %s104 = sphi 0, %s106
      %s107 = sphi 0, %s104
      %s108 = sphi 0, %s107
      %s124 = sphi 0, %s108
    $region4: #{tpu_custom_call.1} parent=1 // loop_header_branch
      %15 = sbr.rel (%p13) target = $region8
    $region5: #{tpu_custom_call.1} parent=1 // loop_body
      %s17 = ssub.s32 %s12, 1
      %s18 = ssub.s32 %s12, 2
      %s25 = sadd.s32 1, %s20
      %p26 = scmp.ge.s32.totalorder %s25, 1
      %s27 = scalar_select %p26, 0, %s25
      %s28 = sadd.s32 1, %s19
      %s29 = scalar_select %p26, %s28, %s19
      %p30 = scmp.ge.s32.totalorder %s29, 2
      %s31 = scalar_select %p30, 0, %s29
      %s32 = ssub.s32 %s19, %s31
      %p33 = scmp.eq.s32.totalorder %s32, 0
      %s35 = sadd.s32 %s34, 1
      %s36 = scalar_select %p33, %s34, %s35
      %p39 = pneg %p33
      %p40 = scmp.eq.s32.totalorder %s12, 1
      %p41 = por %p39, %p40
      %p42 = scmp.ne.s32.totalorder %s34, %s37
      %p43 = scmp.eq.s32.totalorder %s12, 0
      %p44 = por %p42, %p43
      %p45 = scmp.ne.s32.totalorder %s34, %s37
      %p46 = scmp.eq.s32.totalorder %s17, 1
      %p47 = por %p45, %p46
      %p48 = scmp.ne.s32.totalorder %s37, %s38
      %p49 = scmp.eq.s32.totalorder %s17, 0
      %p50 = por %p48, %p49
      %p51 = scmp.ne.s32.totalorder %s37, %s38
      %p52 = scmp.eq.s32.totalorder %s18, 1
      %p53 = por %p51, %p52
      %p55 = scmp.ne.s32.totalorder %s38, %s54
      %p56 = scmp.eq.s32.totalorder %s18, 0
      %p57 = por %p55, %p56
      %s59 = sadd.s32 %s58, 1
      %p62 = scmp.eq.s32.totalorder %s12, 1
      %p63 = scmp.ne.s32.totalorder %s58, %s60
      %p64 = scmp.eq.s32.totalorder %s12, 0
      %p65 = por %p63, %p64
      %p66 = scmp.ne.s32.totalorder %s58, %s60
      %p67 = scmp.eq.s32.totalorder %s17, 1
      %p68 = por %p66, %p67
      %p69 = scmp.ne.s32.totalorder %s60, %s61
      %p70 = scmp.eq.s32.totalorder %s17, 0
      %p71 = por %p69, %p70
      %p72 = scmp.ne.s32.totalorder %s60, %s61
      %p73 = scmp.eq.s32.totalorder %s18, 1
      %p74 = por %p72, %p73
      %p76 = scmp.ne.s32.totalorder %s61, %s75
      %p77 = scmp.eq.s32.totalorder %s18, 0
      %p78 = por %p76, %p77
      %s80 = sadd.s32 %s79, 1
      %p83 = scmp.eq.s32.totalorder %s12, 1
      %p84 = scmp.ne.s32.totalorder %s79, %s81
      %p85 = scmp.eq.s32.totalorder %s12, 0
      %p86 = por %p84, %p85
      %p87 = scmp.ne.s32.totalorder %s79, %s81
      %p88 = scmp.eq.s32.totalorder %s17, 1
      %p89 = por %p87, %p88
      %p90 = scmp.ne.s32.totalorder %s81, %s82
      %p91 = scmp.eq.s32.totalorder %s17, 0
      %p92 = por %p90, %p91
      %p93 = scmp.ne.s32.totalorder %s81, %s82
      %p94 = scmp.eq.s32.totalorder %s18, 1
      %p95 = por %p93, %p94
      %p97 = scmp.ne.s32.totalorder %s82, %s96
      %p98 = scmp.eq.s32.totalorder %s18, 0
      %p99 = por %p97, %p98
      %s100 = ssub.s32 %s19, %s31
      %s101 = ssub.s32 %s20, %s27
      %s102 = sor.u32 %s100, %s101
      %p103 = scmp.eq.s32.totalorder %s102, 0
      %s105 = sadd.s32 %s104, 1
      %s106 = scalar_select %p103, %s104, %s105
      %p109 = pneg %p103
      %p110 = scmp.eq.s32.totalorder %s12, 1
      %p111 = por %p109, %p110
      %p112 = scmp.ne.s32.totalorder %s104, %s107
      %p113 = scmp.eq.s32.totalorder %s12, 0
      %p114 = por %p112, %p113
      %p115 = scmp.ne.s32.totalorder %s104, %s107
      %p116 = scmp.eq.s32.totalorder %s17, 1
      %p117 = por %p115, %p116
      %p118 = scmp.ne.s32.totalorder %s107, %s108
      %p119 = scmp.eq.s32.totalorder %s17, 0
      %p120 = por %p118, %p119
      %p121 = scmp.ne.s32.totalorder %s107, %s108
      %p122 = scmp.eq.s32.totalorder %s18, 1
      %p123 = por %p121, %p122
      %p125 = scmp.ne.s32.totalorder %s108, %s124
      %p126 = scmp.eq.s32.totalorder %s18, 0
      %p127 = por %p125, %p126
      %p128 = scmp.le.s32.totalorder 1, %s12
      %p129 = scmp.lt.s32.totalorder %s12, 3
      %p130 = pnand %p128, %p129
      %p131 = pneg %p130
      // Predicated region
      $region9: #{tpu_custom_call.1} parent=5 // pred_check
        _
      $region10: #{tpu_custom_call.1} parent=5 // pred_check_branch
        %133 = sbr.rel (%p130) target = $region12
      $region11: #{tpu_custom_call.1} parent=5 // pred_region
        %s134 = ssub.s32 %s12, 1
        // Predicated region
        $region13: #{tpu_custom_call.1} parent=11 // pred_check
          %p135 = pneg %p71
        $region14: #{tpu_custom_call.1} parent=11 // pred_check_branch
          %137 = sbr.rel (%p135) target = $region16
        $region15: #{tpu_custom_call.1} parent=11 // pred_region
          _
        $region16: #{tpu_custom_call.1} parent=11 // pred_fallthru
          _
        // Predicated region
        $region17: #{tpu_custom_call.1} parent=11 // pred_check
          %p138 = pneg %p92
        $region18: #{tpu_custom_call.1} parent=11 // pred_check_branch
          %140 = sbr.rel (%p138) target = $region20
        $region19: #{tpu_custom_call.1} parent=11 // pred_region
          _
        $region20: #{tpu_custom_call.1} parent=11 // pred_fallthru
          _
      $region12: #{tpu_custom_call.1} parent=5 // pred_fallthru
        _
      %p141 = scmp.lt.s32.totalorder %s12, 2
      // Predicated region
      $region21: #{tpu_custom_call.1} parent=5 // pred_check
        %p142 = pneg %p141
      $region22: #{tpu_custom_call.1} parent=5 // pred_check_branch
        %144 = sbr.rel (%p142) target = $region24
      $region23: #{tpu_custom_call.1} parent=5 // pred_region
        // Predicated region
        $region25: #{tpu_custom_call.1} parent=23 // pred_check
          %p145 = pneg %p44
        $region26: #{tpu_custom_call.1} parent=23 // pred_check_branch
          %147 = sbr.rel (%p145) target = $region28
        $region27: #{tpu_custom_call.1} parent=23 // pred_region
          %p148 = scmp.lt.s32.totalorder %s19, 1
          %s149 = scalar_select %p148, %s19, 1
          %s150 = smul.addr %s149, 41
          %s151 = smul.addr %s150, 8
          %s152 = scalar_lea.vmem %s0, %s151
        $region28: #{tpu_custom_call.1} parent=23 // pred_fallthru
          _
      $region24: #{tpu_custom_call.1} parent=5 // pred_fallthru
        _
      %p153 = scmp.le.s32.totalorder 1, %s12
      %p154 = scmp.lt.s32.totalorder %s12, 3
      %p155 = pnand %p153, %p154
      %p156 = pneg %p155
      // Predicated region
      $region29: #{tpu_custom_call.1} parent=5 // pred_check
        _
      $region30: #{tpu_custom_call.1} parent=5 // pred_check_branch
        %158 = sbr.rel (%p155) target = $region32
      $region31: #{tpu_custom_call.1} parent=5 // pred_region
        %s159 = ssub.s32 %s12, 1
        %p160 = scmp.lt.s32.totalorder %s21, 1
        %s161 = scalar_select %p160, %s21, 1
        %s162 = smul.addr %s161, 41
        %s163 = smul.addr %s162, 8
        %s164 = scalar_lea.vmem %s0, %s163
        %p165 = pneg %p50
        %p166 = pneg %p47
        %p167 = pneg %p71
        %p168 = pneg %p68
        %p169 = pneg %p92
        %p170 = pneg %p89
        %p171 = pneg %p120
        %p172 = pneg %p117
        %s173 = sand.u32 %s107, 1
        %s174 = scalar_lea.sflag [#allocation3], %s173
        %s175 = sand.u32 %s107, 1
        %s176 = smul.addr %s175, 288
        %s177 = scalar_lea.vmem [#allocation2], %s176
        %p178 = scmp.lt.s32.totalorder %s21, 1
        %s179 = scalar_select %p178, %s21, 1
        %s180 = smul.addr %s179, 41
        %s181 = smul.addr %s180, 8
        %s182 = scalar_lea.vmem %s0, %s181
        %s183 = smul.u32 36, %s22
        %s184 = smul.u32 %s22, 288
        %s185 = scalar_lea.vmem %s182, %s184
        %v186 = vld [vmem:[%s185] sm:$0xff]
        %v187 = vld [vmem:[%s185 + $0x8] sm:$0xff]
        %v188 = vld [vmem:[%s185 + $0x10] sm:$0xff]
        %v189 = vld [vmem:[%s185 + $0x18] sm:$0xff]
        %v190 = vld [vmem:[%s185 + $0x20] sm:$0xff]
        %v191 = vld [vmem:[%s185 + $0x28] sm:$0xff]
        %v192 = vld [vmem:[%s185 + $0x30] sm:$0xff]
        %v193 = vld [vmem:[%s185 + $0x38] sm:$0xff]
        %v194 = vld [vmem:[%s185 + $0x40] sm:$0xff]
        %v195 = vld [vmem:[%s185 + $0x48] sm:$0xff]
        %v196 = vld [vmem:[%s185 + $0x50] sm:$0xff]
        %v197 = vld [vmem:[%s185 + $0x58] sm:$0xff]
        %v198 = vld [vmem:[%s185 + $0x60] sm:$0xff]
        %v199 = vld [vmem:[%s185 + $0x68] sm:$0xff]
        %v200 = vld [vmem:[%s185 + $0x70] sm:$0xff]
        %v201 = vld [vmem:[%s185 + $0x78] sm:$0xff]
        %v202 = vld [vmem:[%s185 + $0x80] sm:$0xff]
        %v203 = vld [vmem:[%s185 + $0x88] sm:$0xff]
        %v204 = vld [vmem:[%s185 + $0x90] sm:$0xff]
        %v205 = vld [vmem:[%s185 + $0x98] sm:$0xff]
        %v206 = vld [vmem:[%s185 + $0xa0] sm:$0xff]
        %v207 = vld [vmem:[%s185 + $0xa8] sm:$0xff]
        %v208 = vld [vmem:[%s185 + $0xb0] sm:$0xff]
        %v209 = vld [vmem:[%s185 + $0xb8] sm:$0xff]
        %v210 = vld [vmem:[%s185 + $0xc0] sm:$0xff]
        %v211 = vld [vmem:[%s185 + $0xc8] sm:$0xff]
        %v212 = vld [vmem:[%s185 + $0xd0] sm:$0xff]
        %v213 = vld [vmem:[%s185 + $0xd8] sm:$0xff]
        %v214 = vld [vmem:[%s185 + $0xe0] sm:$0xff]
        %v215 = vld [vmem:[%s185 + $0xe8] sm:$0xff]
        %v216 = vld [vmem:[%s185 + $0xf0] sm:$0xff]
        %v217 = vld [vmem:[%s185 + $0xf8] sm:$0xff]
        %v218 = vld [vmem:[%s185 + $0x100] sm:$0xff]
        %v219 = vld [vmem:[%s185 + $0x108] sm:$0xff]
        %v220 = vld [vmem:[%s185 + $0x110] sm:$0xff]
        %v221 = vld [vmem:[%s185 + $0x118] sm:$0xff]
        %v222 = vld [vmem:[%s1] sm:$0xff]
        %v223 = vld [vmem:[%s1 + $0x8] sm:$0xf]
        %s224 = sadd.s32 %s184, 18
        %s225 = scalar_lea.vmem %s182, %s224
        %v226 = vld [vmem:[%s225] sm:$0xff]
        %v227 = vld [vmem:[%s225 + $0x8] sm:$0xff]
        %v228 = vld [vmem:[%s225 + $0x10] sm:$0xff]
        %v229 = vld [vmem:[%s225 + $0x18] sm:$0xff]
        %v230 = vld [vmem:[%s225 + $0x20] sm:$0xff]
        %v231 = vld [vmem:[%s225 + $0x28] sm:$0xff]
        %v232 = vld [vmem:[%s225 + $0x30] sm:$0xff]
        %v233 = vld [vmem:[%s225 + $0x38] sm:$0xff]
        %v234 = vld [vmem:[%s225 + $0x40] sm:$0xff]
        %v235 = vld [vmem:[%s225 + $0x48] sm:$0xff]
        %v236 = vld [vmem:[%s225 + $0x50] sm:$0xff]
        %v237 = vld [vmem:[%s225 + $0x58] sm:$0xff]
        %v238 = vld [vmem:[%s225 + $0x60] sm:$0xff]
        %v239 = vld [vmem:[%s225 + $0x68] sm:$0xff]
        %v240 = vld [vmem:[%s225 + $0x70] sm:$0xff]
        %v241 = vld [vmem:[%s225 + $0x78] sm:$0xff]
        %v242 = vld [vmem:[%s225 + $0x80] sm:$0xff]
        %v243 = vld [vmem:[%s225 + $0x88] sm:$0xff]
        %v244 = vld [vmem:[%s225 + $0x90] sm:$0xff]
        %v245 = vld [vmem:[%s225 + $0x98] sm:$0xff]
        %v246 = vld [vmem:[%s225 + $0xa0] sm:$0xff]
        %v247 = vld [vmem:[%s225 + $0xa8] sm:$0xff]
        %v248 = vld [vmem:[%s225 + $0xb0] sm:$0xff]
        %v249 = vld [vmem:[%s225 + $0xb8] sm:$0xff]
        %v250 = vld [vmem:[%s225 + $0xc0] sm:$0xff]
        %v251 = vld [vmem:[%s225 + $0xc8] sm:$0xff]
        %v252 = vld [vmem:[%s225 + $0xd0] sm:$0xff]
        %v253 = vld [vmem:[%s225 + $0xd8] sm:$0xff]
        %v254 = vld [vmem:[%s225 + $0xe0] sm:$0xff]
        %v255 = vld [vmem:[%s225 + $0xe8] sm:$0xff]
        %v256 = vld [vmem:[%s225 + $0xf0] sm:$0xff]
        %v257 = vld [vmem:[%s225 + $0xf8] sm:$0xff]
        %v258 = vld [vmem:[%s225 + $0x100] sm:$0xff]
        %v259 = vld [vmem:[%s225 + $0x108] sm:$0xff]
        %v260 = vld [vmem:[%s225 + $0x110] sm:$0xff]
        %v261 = vld [vmem:[%s225 + $0x118] sm:$0xff]
        %s262 = scalar_lea.vmem %s1, 16
        %v263 = vld [vmem:[%s262] sm:$0xff]
        %v264 = vld [vmem:[%s262 + $0x8] sm:$0xf]
        %vm265 = vcmask 97280
        %v267 = vsel %vm265, %v226, 0
        %v270 = vsel %vm265, %v227, 0
        %v273 = vsel %vm265, %v228, 0
        %v276 = vsel %vm265, %v229, 0
        %v279 = vsel %vm265, %v230, 0
        %v282 = vsel %vm265, %v231, 0
        %v285 = vsel %vm265, %v232, 0
        %v288 = vsel %vm265, %v233, 0
        %v291 = vsel %vm265, %v234, 0
        %v294 = vsel %vm265, %v235, 0
        %v297 = vsel %vm265, %v236, 0
        %v300 = vsel %vm265, %v237, 0
        %v303 = vsel %vm265, %v238, 0
        %v306 = vsel %vm265, %v239, 0
        %v309 = vsel %vm265, %v240, 0
        %v312 = vsel %vm265, %v241, 0
        %v315 = vsel %vm265, %v242, 0
        %v318 = vsel %vm265, %v243, 0
        %v321 = vsel %vm265, %v244, 0
        %v324 = vsel %vm265, %v245, 0
        %v327 = vsel %vm265, %v246, 0
        %v330 = vsel %vm265, %v247, 0
        %v333 = vsel %vm265, %v248, 0
        %v336 = vsel %vm265, %v249, 0
        %v339 = vsel %vm265, %v250, 0
        %v342 = vsel %vm265, %v251, 0
        %v345 = vsel %vm265, %v252, 0
        %v348 = vsel %vm265, %v253, 0
        %v351 = vsel %vm265, %v254, 0
        %v354 = vsel %vm265, %v255, 0
        %v357 = vsel %vm265, %v256, 0
        %v360 = vsel %vm265, %v257, 0
        %v363 = vsel %vm265, %v258, 0
        %v366 = vsel %vm265, %v259, 0
        %v369 = vsel %vm265, %v260, 0
        %v372 = vsel %vm265, %v261, 0
        %vm374 = vcmask 1043456
        %v376 = vsel %vm374, %v264, 0
        %378 = vmatpush.msra.mxu0 0.0
        %379 = vmatpush.msra.mxu0 0.0
        %380 = vmatpush.msra.mxu0 0.0
        %381 = vmatpush.msra.mxu0 0.0
        %382 = vmatpush.msra.mxu0 0.0
        %383 = vmatpush.msra.mxu0 0.0
        %384 = vmatpush.msra.mxu0 0.0
        %385 = vmatpush.msra.mxu0 0.0
        %386 = vmatpush.msra.mxu0 0.0
        %387 = vmatpush.msra.mxu0 0.0
        %388 = vmatpush.msra.mxu0 0.0
        %389 = vmatpush.msra.mxu0 0.0
        %390 = vmatpush.msra.mxu0 0.0
        %391 = vmatpush.msra.mxu0 0.0
        %392 = vmatpush.msra.mxu0 %v376
        %393 = vmatpush.msra.mxu0 %v263
        %394 = vmatmul.f32.gmra.mxu0 %v267
        %v395 = vpop.f32.mrf.mxu0
        %v396 = vadd.f32 0.0, %v395
        %397 = vmatmul.f32.gmra.mxu0 %v270
        %v398 = vpop.f32.mrf.mxu0
        %v399 = vadd.f32 0.0, %v398
        %400 = vmatmul.f32.gmra.mxu0 %v273
        %v401 = vpop.f32.mrf.mxu0
        %v402 = vadd.f32 0.0, %v401
        %403 = vmatmul.f32.gmra.mxu0 %v276
        %v404 = vpop.f32.mrf.mxu0
        %v405 = vadd.f32 0.0, %v404
        %406 = vmatmul.f32.gmra.mxu0 %v279
        %v407 = vpop.f32.mrf.mxu0
        %v408 = vadd.f32 0.0, %v407
        %409 = vmatmul.f32.gmra.mxu0 %v282
        %v410 = vpop.f32.mrf.mxu0
        %v411 = vadd.f32 0.0, %v410
        %412 = vmatmul.f32.gmra.mxu0 %v285
        %v413 = vpop.f32.mrf.mxu0
        %v414 = vadd.f32 0.0, %v413
        %415 = vmatmul.f32.gmra.mxu0 %v288
        %v416 = vpop.f32.mrf.mxu0
        %v417 = vadd.f32 0.0, %v416
        %418 = vmatmul.f32.gmra.mxu0 %v291
        %v419 = vpop.f32.mrf.mxu0
        %v420 = vadd.f32 0.0, %v419
        %421 = vmatmul.f32.gmra.mxu0 %v294
        %v422 = vpop.f32.mrf.mxu0
        %v423 = vadd.f32 0.0, %v422
        %424 = vmatmul.f32.gmra.mxu0 %v297
        %v425 = vpop.f32.mrf.mxu0
        %v426 = vadd.f32 0.0, %v425
        %427 = vmatmul.f32.gmra.mxu0 %v300
        %v428 = vpop.f32.mrf.mxu0
        %v429 = vadd.f32 0.0, %v428
        %430 = vmatmul.f32.gmra.mxu0 %v303
        %v431 = vpop.f32.mrf.mxu0
        %v432 = vadd.f32 0.0, %v431
        %433 = vmatmul.f32.gmra.mxu0 %v306
        %v434 = vpop.f32.mrf.mxu0
        %v435 = vadd.f32 0.0, %v434
        %436 = vmatmul.f32.gmra.mxu0 %v309
        %v437 = vpop.f32.mrf.mxu0
        %v438 = vadd.f32 0.0, %v437
        %439 = vmatmul.f32.gmra.mxu0 %v312
        %v440 = vpop.f32.mrf.mxu0
        %v441 = vadd.f32 0.0, %v440
        %442 = vmatmul.f32.gmra.mxu0 %v315
        %v443 = vpop.f32.mrf.mxu0
        %v444 = vadd.f32 0.0, %v443
        %445 = vmatmul.f32.gmra.mxu0 %v318
        %v446 = vpop.f32.mrf.mxu0
        %v447 = vadd.f32 0.0, %v446
        %448 = vmatmul.f32.gmra.mxu0 %v321
        %v449 = vpop.f32.mrf.mxu0
        %v450 = vadd.f32 0.0, %v449
        %451 = vmatmul.f32.gmra.mxu0 %v324
        %v452 = vpop.f32.mrf.mxu0
        %v453 = vadd.f32 0.0, %v452
        %454 = vmatmul.f32.gmra.mxu0 %v327
        %v455 = vpop.f32.mrf.mxu0
        %v456 = vadd.f32 0.0, %v455
        %457 = vmatmul.f32.gmra.mxu0 %v330
        %v458 = vpop.f32.mrf.mxu0
        %v459 = vadd.f32 0.0, %v458
        %460 = vmatmul.f32.gmra.mxu0 %v333
        %v461 = vpop.f32.mrf.mxu0
        %v462 = vadd.f32 0.0, %v461
        %463 = vmatmul.f32.gmra.mxu0 %v336
        %v464 = vpop.f32.mrf.mxu0
        %v465 = vadd.f32 0.0, %v464
        %466 = vmatmul.f32.gmra.mxu0 %v339
        %v467 = vpop.f32.mrf.mxu0
        %v468 = vadd.f32 0.0, %v467
        %469 = vmatmul.f32.gmra.mxu0 %v342
        %v470 = vpop.f32.mrf.mxu0
        %v471 = vadd.f32 0.0, %v470
        %472 = vmatmul.f32.gmra.mxu0 %v345
        %v473 = vpop.f32.mrf.mxu0
        %v474 = vadd.f32 0.0, %v473
        %475 = vmatmul.f32.gmra.mxu0 %v348
        %v476 = vpop.f32.mrf.mxu0
        %v477 = vadd.f32 0.0, %v476
        %478 = vmatmul.f32.gmra.mxu0 %v351
        %v479 = vpop.f32.mrf.mxu0
        %v480 = vadd.f32 0.0, %v479
        %481 = vmatmul.f32.gmra.mxu0 %v354
        %v482 = vpop.f32.mrf.mxu0
        %v483 = vadd.f32 0.0, %v482
        %484 = vmatmul.f32.gmra.mxu0 %v357
        %v485 = vpop.f32.mrf.mxu0
        %v486 = vadd.f32 0.0, %v485
        %487 = vmatmul.f32.gmra.mxu0 %v360
        %v488 = vpop.f32.mrf.mxu0
        %v489 = vadd.f32 0.0, %v488
        %490 = vmatmul.f32.gmra.mxu0 %v363
        %v491 = vpop.f32.mrf.mxu0
        %v492 = vadd.f32 0.0, %v491
        %493 = vmatmul.f32.gmra.mxu0 %v366
        %v494 = vpop.f32.mrf.mxu0
        %v495 = vadd.f32 0.0, %v494
        %496 = vmatmul.f32.gmra.mxu0 %v369
        %v497 = vpop.f32.mrf.mxu0
        %v498 = vadd.f32 0.0, %v497
        %499 = vmatmul.f32.gmra.mxu0 %v372
        %v500 = vpop.f32.mrf.mxu0
        %v501 = vadd.f32 0.0, %v500
        %502 = vdwg.mxu0
        %v504 = vsel %vm265, %v186, 0
        %v507 = vsel %vm265, %v187, 0
        %v510 = vsel %vm265, %v188, 0
        %v513 = vsel %vm265, %v189, 0
        %v516 = vsel %vm265, %v190, 0
        %v519 = vsel %vm265, %v191, 0
        %v522 = vsel %vm265, %v192, 0
        %v525 = vsel %vm265, %v193, 0
        %v528 = vsel %vm265, %v194, 0
        %v531 = vsel %vm265, %v195, 0
        %v534 = vsel %vm265, %v196, 0
        %v537 = vsel %vm265, %v197, 0
        %v540 = vsel %vm265, %v198, 0
        %v543 = vsel %vm265, %v199, 0
        %v546 = vsel %vm265, %v200, 0
        %v549 = vsel %vm265, %v201, 0
        %v552 = vsel %vm265, %v202, 0
        %v555 = vsel %vm265, %v203, 0
        %v558 = vsel %vm265, %v204, 0
        %v561 = vsel %vm265, %v205, 0
        %v564 = vsel %vm265, %v206, 0
        %v567 = vsel %vm265, %v207, 0
        %v570 = vsel %vm265, %v208, 0
        %v573 = vsel %vm265, %v209, 0
        %v576 = vsel %vm265, %v210, 0
        %v579 = vsel %vm265, %v211, 0
        %v582 = vsel %vm265, %v212, 0
        %v585 = vsel %vm265, %v213, 0
        %v588 = vsel %vm265, %v214, 0
        %v591 = vsel %vm265, %v215, 0
        %v594 = vsel %vm265, %v216, 0
        %v597 = vsel %vm265, %v217, 0
        %v600 = vsel %vm265, %v218, 0
        %v603 = vsel %vm265, %v219, 0
        %v606 = vsel %vm265, %v220, 0
        %v609 = vsel %vm265, %v221, 0
        %v612 = vsel %vm374, %v223, 0
        %614 = vmatpush.msra.mxu0 0.0
        %615 = vmatpush.msra.mxu0 0.0
        %616 = vmatpush.msra.mxu0 0.0
        %617 = vmatpush.msra.mxu0 0.0
        %618 = vmatpush.msra.mxu0 0.0
        %619 = vmatpush.msra.mxu0 0.0
        %620 = vmatpush.msra.mxu0 0.0
        %621 = vmatpush.msra.mxu0 0.0
        %622 = vmatpush.msra.mxu0 0.0
        %623 = vmatpush.msra.mxu0 0.0
        %624 = vmatpush.msra.mxu0 0.0
        %625 = vmatpush.msra.mxu0 0.0
        %626 = vmatpush.msra.mxu0 0.0
        %627 = vmatpush.msra.mxu0 0.0
        %628 = vmatpush.msra.mxu0 %v612
        %629 = vmatpush.msra.mxu0 %v222
        %630 = vmatmul.f32.gmra.mxu0 %v504
        %v631 = vpop.f32.mrf.mxu0
        %v632 = vadd.f32 %v396, %v631
        %633 = vmatmul.f32.gmra.mxu0 %v507
        %v634 = vpop.f32.mrf.mxu0
        %v635 = vadd.f32 %v399, %v634
        %636 = vmatmul.f32.gmra.mxu0 %v510
        %v637 = vpop.f32.mrf.mxu0
        %v638 = vadd.f32 %v402, %v637
        %639 = vmatmul.f32.gmra.mxu0 %v513
        %v640 = vpop.f32.mrf.mxu0
        %v641 = vadd.f32 %v405, %v640
        %642 = vmatmul.f32.gmra.mxu0 %v516
        %v643 = vpop.f32.mrf.mxu0
        %v644 = vadd.f32 %v408, %v643
        %645 = vmatmul.f32.gmra.mxu0 %v519
        %v646 = vpop.f32.mrf.mxu0
        %v647 = vadd.f32 %v411, %v646
        %648 = vmatmul.f32.gmra.mxu0 %v522
        %v649 = vpop.f32.mrf.mxu0
        %v650 = vadd.f32 %v414, %v649
        %651 = vmatmul.f32.gmra.mxu0 %v525
        %v652 = vpop.f32.mrf.mxu0
        %v653 = vadd.f32 %v417, %v652
        %654 = vmatmul.f32.gmra.mxu0 %v528
        %v655 = vpop.f32.mrf.mxu0
        %v656 = vadd.f32 %v420, %v655
        %657 = vmatmul.f32.gmra.mxu0 %v531
        %v658 = vpop.f32.mrf.mxu0
        %v659 = vadd.f32 %v423, %v658
        %660 = vmatmul.f32.gmra.mxu0 %v534
        %v661 = vpop.f32.mrf.mxu0
        %v662 = vadd.f32 %v426, %v661
        %663 = vmatmul.f32.gmra.mxu0 %v537
        %v664 = vpop.f32.mrf.mxu0
        %v665 = vadd.f32 %v429, %v664
        %666 = vmatmul.f32.gmra.mxu0 %v540
        %v667 = vpop.f32.mrf.mxu0
        %v668 = vadd.f32 %v432, %v667
        %669 = vmatmul.f32.gmra.mxu0 %v543
        %v670 = vpop.f32.mrf.mxu0
        %v671 = vadd.f32 %v435, %v670
        %672 = vmatmul.f32.gmra.mxu0 %v546
        %v673 = vpop.f32.mrf.mxu0
        %v674 = vadd.f32 %v438, %v673
        %675 = vmatmul.f32.gmra.mxu0 %v549
        %v676 = vpop.f32.mrf.mxu0
        %v677 = vadd.f32 %v441, %v676
        %678 = vmatmul.f32.gmra.mxu0 %v552
        %v679 = vpop.f32.mrf.mxu0
        %v680 = vadd.f32 %v444, %v679
        %681 = vmatmul.f32.gmra.mxu0 %v555
        %v682 = vpop.f32.mrf.mxu0
        %v683 = vadd.f32 %v447, %v682
        %684 = vmatmul.f32.gmra.mxu0 %v558
        %v685 = vpop.f32.mrf.mxu0
        %v686 = vadd.f32 %v450, %v685
        %687 = vmatmul.f32.gmra.mxu0 %v561
        %v688 = vpop.f32.mrf.mxu0
        %v689 = vadd.f32 %v453, %v688
        %690 = vmatmul.f32.gmra.mxu0 %v564
        %v691 = vpop.f32.mrf.mxu0
        %v692 = vadd.f32 %v456, %v691
        %693 = vmatmul.f32.gmra.mxu0 %v567
        %v694 = vpop.f32.mrf.mxu0
        %v695 = vadd.f32 %v459, %v694
        %696 = vmatmul.f32.gmra.mxu0 %v570
        %v697 = vpop.f32.mrf.mxu0
        %v698 = vadd.f32 %v462, %v697
        %699 = vmatmul.f32.gmra.mxu0 %v573
        %v700 = vpop.f32.mrf.mxu0
        %v701 = vadd.f32 %v465, %v700
        %702 = vmatmul.f32.gmra.mxu0 %v576
        %v703 = vpop.f32.mrf.mxu0
        %v704 = vadd.f32 %v468, %v703
        %705 = vmatmul.f32.gmra.mxu0 %v579
        %v706 = vpop.f32.mrf.mxu0
        %v707 = vadd.f32 %v471, %v706
        %708 = vmatmul.f32.gmra.mxu0 %v582
        %v709 = vpop.f32.mrf.mxu0
        %v710 = vadd.f32 %v474, %v709
        %711 = vmatmul.f32.gmra.mxu0 %v585
        %v712 = vpop.f32.mrf.mxu0
        %v713 = vadd.f32 %v477, %v712
        %714 = vmatmul.f32.gmra.mxu0 %v588
        %v715 = vpop.f32.mrf.mxu0
        %v716 = vadd.f32 %v480, %v715
        %717 = vmatmul.f32.gmra.mxu0 %v591
        %v718 = vpop.f32.mrf.mxu0
        %v719 = vadd.f32 %v483, %v718
        %720 = vmatmul.f32.gmra.mxu0 %v594
        %v721 = vpop.f32.mrf.mxu0
        %v722 = vadd.f32 %v486, %v721
        %723 = vmatmul.f32.gmra.mxu0 %v597
        %v724 = vpop.f32.mrf.mxu0
        %v725 = vadd.f32 %v489, %v724
        %726 = vmatmul.f32.gmra.mxu0 %v600
        %v727 = vpop.f32.mrf.mxu0
        %v728 = vadd.f32 %v492, %v727
        %729 = vmatmul.f32.gmra.mxu0 %v603
        %v730 = vpop.f32.mrf.mxu0
        %v731 = vadd.f32 %v495, %v730
        %732 = vmatmul.f32.gmra.mxu0 %v606
        %v733 = vpop.f32.mrf.mxu0
        %v734 = vadd.f32 %v498, %v733
        %735 = vmatmul.f32.gmra.mxu0 %v609
        %v736 = vpop.f32.mrf.mxu0
        %v737 = vadd.f32 %v501, %v736
        %738 = vdwg.mxu0
        %s739 = sadd.s32 %s184, 36
        %s740 = scalar_lea.vmem %s182, %s739
        %v741 = vld [vmem:[%s740] sm:$0xff]
        %v742 = vld [vmem:[%s740 + $0x8] sm:$0xff]
        %v743 = vld [vmem:[%s740 + $0x10] sm:$0xff]
        %v744 = vld [vmem:[%s740 + $0x18] sm:$0xff]
        %v745 = vld [vmem:[%s740 + $0x20] sm:$0xff]
        %v746 = vld [vmem:[%s740 + $0x28] sm:$0xff]
        %v747 = vld [vmem:[%s740 + $0x30] sm:$0xff]
        %v748 = vld [vmem:[%s740 + $0x38] sm:$0xff]
        %v749 = vld [vmem:[%s740 + $0x40] sm:$0xff]
        %v750 = vld [vmem:[%s740 + $0x48] sm:$0xff]
        %v751 = vld [vmem:[%s740 + $0x50] sm:$0xff]
        %v752 = vld [vmem:[%s740 + $0x58] sm:$0xff]
        %v753 = vld [vmem:[%s740 + $0x60] sm:$0xff]
        %v754 = vld [vmem:[%s740 + $0x68] sm:$0xff]
        %v755 = vld [vmem:[%s740 + $0x70] sm:$0xff]
        %v756 = vld [vmem:[%s740 + $0x78] sm:$0xff]
        %v757 = vld [vmem:[%s740 + $0x80] sm:$0xff]
        %v758 = vld [vmem:[%s740 + $0x88] sm:$0xff]
        %v759 = vld [vmem:[%s740 + $0x90] sm:$0xff]
        %v760 = vld [vmem:[%s740 + $0x98] sm:$0xff]
        %v761 = vld [vmem:[%s740 + $0xa0] sm:$0xff]
        %v762 = vld [vmem:[%s740 + $0xa8] sm:$0xff]
        %v763 = vld [vmem:[%s740 + $0xb0] sm:$0xff]
        %v764 = vld [vmem:[%s740 + $0xb8] sm:$0xff]
        %v765 = vld [vmem:[%s740 + $0xc0] sm:$0xff]
        %v766 = vld [vmem:[%s740 + $0xc8] sm:$0xff]
        %v767 = vld [vmem:[%s740 + $0xd0] sm:$0xff]
        %v768 = vld [vmem:[%s740 + $0xd8] sm:$0xff]
        %v769 = vld [vmem:[%s740 + $0xe0] sm:$0xff]
        %v770 = vld [vmem:[%s740 + $0xe8] sm:$0xff]
        %v771 = vld [vmem:[%s740 + $0xf0] sm:$0xff]
        %v772 = vld [vmem:[%s740 + $0xf8] sm:$0xff]
        %v773 = vld [vmem:[%s740 + $0x100] sm:$0xff]
        %v774 = vld [vmem:[%s740 + $0x108] sm:$0xff]
        %v775 = vld [vmem:[%s740 + $0x110] sm:$0xff]
        %v776 = vld [vmem:[%s740 + $0x118] sm:$0xff]
        %s777 = scalar_lea.vmem %s1, 32
        %v778 = vld [vmem:[%s777] sm:$0xff]
        %v779 = vld [vmem:[%s777 + $0x8] sm:$0xf]
        %v781 = vsel %vm265, %v741, 0
        %v784 = vsel %vm265, %v742, 0
        %v787 = vsel %vm265, %v743, 0
        %v790 = vsel %vm265, %v744, 0
        %v793 = vsel %vm265, %v745, 0
        %v796 = vsel %vm265, %v746, 0
        %v799 = vsel %vm265, %v747, 0
        %v802 = vsel %vm265, %v748, 0
        %v805 = vsel %vm265, %v749, 0
        %v808 = vsel %vm265, %v750, 0
        %v811 = vsel %vm265, %v751, 0
        %v814 = vsel %vm265, %v752, 0
        %v817 = vsel %vm265, %v753, 0
        %v820 = vsel %vm265, %v754, 0
        %v823 = vsel %vm265, %v755, 0
        %v826 = vsel %vm265, %v756, 0
        %v829 = vsel %vm265, %v757, 0
        %v832 = vsel %vm265, %v758, 0
        %v835 = vsel %vm265, %v759, 0
        %v838 = vsel %vm265, %v760, 0
        %v841 = vsel %vm265, %v761, 0
        %v844 = vsel %vm265, %v762, 0
        %v847 = vsel %vm265, %v763, 0
        %v850 = vsel %vm265, %v764, 0
        %v853 = vsel %vm265, %v765, 0
        %v856 = vsel %vm265, %v766, 0
        %v859 = vsel %vm265, %v767, 0
        %v862 = vsel %vm265, %v768, 0
        %v865 = vsel %vm265, %v769, 0
        %v868 = vsel %vm265, %v770, 0
        %v871 = vsel %vm265, %v771, 0
        %v874 = vsel %vm265, %v772, 0
        %v877 = vsel %vm265, %v773, 0
        %v880 = vsel %vm265, %v774, 0
        %v883 = vsel %vm265, %v775, 0
        %v886 = vsel %vm265, %v776, 0
        %v889 = vsel %vm374, %v779, 0
        %891 = vmatpush.msra.mxu0 0.0
        %892 = vmatpush.msra.mxu0 0.0
        %893 = vmatpush.msra.mxu0 0.0
        %894 = vmatpush.msra.mxu0 0.0
        %895 = vmatpush.msra.mxu0 0.0
        %896 = vmatpush.msra.mxu0 0.0
        %897 = vmatpush.msra.mxu0 0.0
        %898 = vmatpush.msra.mxu0 0.0
        %899 = vmatpush.msra.mxu0 0.0
        %900 = vmatpush.msra.mxu0 0.0
        %901 = vmatpush.msra.mxu0 0.0
        %902 = vmatpush.msra.mxu0 0.0
        %903 = vmatpush.msra.mxu0 0.0
        %904 = vmatpush.msra.mxu0 0.0
        %905 = vmatpush.msra.mxu0 %v889
        %906 = vmatpush.msra.mxu0 %v778
        %907 = vmatmul.f32.gmra.mxu0 %v781
        %v908 = vpop.f32.mrf.mxu0
        %v909 = vadd.f32 0.0, %v908
        %910 = vmatmul.f32.gmra.mxu0 %v784
        %v911 = vpop.f32.mrf.mxu0
        %v912 = vadd.f32 0.0, %v911
        %913 = vmatmul.f32.gmra.mxu0 %v787
        %v914 = vpop.f32.mrf.mxu0
        %v915 = vadd.f32 0.0, %v914
        %916 = vmatmul.f32.gmra.mxu0 %v790
        %v917 = vpop.f32.mrf.mxu0
        %v918 = vadd.f32 0.0, %v917
        %919 = vmatmul.f32.gmra.mxu0 %v793
        %v920 = vpop.f32.mrf.mxu0
        %v921 = vadd.f32 0.0, %v920
        %922 = vmatmul.f32.gmra.mxu0 %v796
        %v923 = vpop.f32.mrf.mxu0
        %v924 = vadd.f32 0.0, %v923
        %925 = vmatmul.f32.gmra.mxu0 %v799
        %v926 = vpop.f32.mrf.mxu0
        %v927 = vadd.f32 0.0, %v926
        %928 = vmatmul.f32.gmra.mxu0 %v802
        %v929 = vpop.f32.mrf.mxu0
        %v930 = vadd.f32 0.0, %v929
        %931 = vmatmul.f32.gmra.mxu0 %v805
        %v932 = vpop.f32.mrf.mxu0
        %v933 = vadd.f32 0.0, %v932
        %934 = vmatmul.f32.gmra.mxu0 %v808
        %v935 = vpop.f32.mrf.mxu0
        %v936 = vadd.f32 0.0, %v935
        %937 = vmatmul.f32.gmra.mxu0 %v811
        %v938 = vpop.f32.mrf.mxu0
        %v939 = vadd.f32 0.0, %v938
        %940 = vmatmul.f32.gmra.mxu0 %v814
        %v941 = vpop.f32.mrf.mxu0
        %v942 = vadd.f32 0.0, %v941
        %943 = vmatmul.f32.gmra.mxu0 %v817
        %v944 = vpop.f32.mrf.mxu0
        %v945 = vadd.f32 0.0, %v944
        %946 = vmatmul.f32.gmra.mxu0 %v820
        %v947 = vpop.f32.mrf.mxu0
        %v948 = vadd.f32 0.0, %v947
        %949 = vmatmul.f32.gmra.mxu0 %v823
        %v950 = vpop.f32.mrf.mxu0
        %v951 = vadd.f32 0.0, %v950
        %952 = vmatmul.f32.gmra.mxu0 %v826
        %v953 = vpop.f32.mrf.mxu0
        %v954 = vadd.f32 0.0, %v953
        %955 = vmatmul.f32.gmra.mxu0 %v829
        %v956 = vpop.f32.mrf.mxu0
        %v957 = vadd.f32 0.0, %v956
        %958 = vmatmul.f32.gmra.mxu0 %v832
        %v959 = vpop.f32.mrf.mxu0
        %v960 = vadd.f32 0.0, %v959
        %961 = vmatmul.f32.gmra.mxu0 %v835
        %v962 = vpop.f32.mrf.mxu0
        %v963 = vadd.f32 0.0, %v962
        %964 = vmatmul.f32.gmra.mxu0 %v838
        %v965 = vpop.f32.mrf.mxu0
        %v966 = vadd.f32 0.0, %v965
        %967 = vmatmul.f32.gmra.mxu0 %v841
        %v968 = vpop.f32.mrf.mxu0
        %v969 = vadd.f32 0.0, %v968
        %970 = vmatmul.f32.gmra.mxu0 %v844
        %v971 = vpop.f32.mrf.mxu0
        %v972 = vadd.f32 0.0, %v971
        %973 = vmatmul.f32.gmra.mxu0 %v847
        %v974 = vpop.f32.mrf.mxu0
        %v975 = vadd.f32 0.0, %v974
        %976 = vmatmul.f32.gmra.mxu0 %v850
        %v977 = vpop.f32.mrf.mxu0
        %v978 = vadd.f32 0.0, %v977
        %979 = vmatmul.f32.gmra.mxu0 %v853
        %v980 = vpop.f32.mrf.mxu0
        %v981 = vadd.f32 0.0, %v980
        %982 = vmatmul.f32.gmra.mxu0 %v856
        %v983 = vpop.f32.mrf.mxu0
        %v984 = vadd.f32 0.0, %v983
        %985 = vmatmul.f32.gmra.mxu0 %v859
        %v986 = vpop.f32.mrf.mxu0
        %v987 = vadd.f32 0.0, %v986
        %988 = vmatmul.f32.gmra.mxu0 %v862
        %v989 = vpop.f32.mrf.mxu0
        %v990 = vadd.f32 0.0, %v989
        %991 = vmatmul.f32.gmra.mxu0 %v865
        %v992 = vpop.f32.mrf.mxu0
        %v993 = vadd.f32 0.0, %v992
        %994 = vmatmul.f32.gmra.mxu0 %v868
        %v995 = vpop.f32.mrf.mxu0
        %v996 = vadd.f32 0.0, %v995
        %997 = vmatmul.f32.gmra.mxu0 %v871
        %v998 = vpop.f32.mrf.mxu0
        %v999 = vadd.f32 0.0, %v998
        %1000 = vmatmul.f32.gmra.mxu0 %v874
        %v1001 = vpop.f32.mrf.mxu0
        %v1002 = vadd.f32 0.0, %v1001
        %1003 = vmatmul.f32.gmra.mxu0 %v877
        %v1004 = vpop.f32.mrf.mxu0
        %v1005 = vadd.f32 0.0, %v1004
        %1006 = vmatmul.f32.gmra.mxu0 %v880
        %v1007 = vpop.f32.mrf.mxu0
        %v1008 = vadd.f32 0.0, %v1007
        %1009 = vmatmul.f32.gmra.mxu0 %v883
        %v1010 = vpop.f32.mrf.mxu0
        %v1011 = vadd.f32 0.0, %v1010
        %1012 = vmatmul.f32.gmra.mxu0 %v886
        %v1013 = vpop.f32.mrf.mxu0
        %v1014 = vadd.f32 0.0, %v1013
        %1015 = vdwg.mxu0
        %v1016 = vadd.f32 %v632, %v909
        %v1017 = vadd.f32 %v635, %v912
        %v1018 = vadd.f32 %v638, %v915
        %v1019 = vadd.f32 %v641, %v918
        %v1020 = vadd.f32 %v644, %v921
        %v1021 = vadd.f32 %v647, %v924
        %v1022 = vadd.f32 %v650, %v927
        %v1023 = vadd.f32 %v653, %v930
        %v1024 = vadd.f32 %v656, %v933
        %v1025 = vadd.f32 %v659, %v936
        %v1026 = vadd.f32 %v662, %v939
        %v1027 = vadd.f32 %v665, %v942
        %v1028 = vadd.f32 %v668, %v945
        %v1029 = vadd.f32 %v671, %v948
        %v1030 = vadd.f32 %v674, %v951
        %v1031 = vadd.f32 %v677, %v954
        %v1032 = vadd.f32 %v680, %v957
        %v1033 = vadd.f32 %v683, %v960
        %v1034 = vadd.f32 %v686, %v963
        %v1035 = vadd.f32 %v689, %v966
        %v1036 = vadd.f32 %v692, %v969
        %v1037 = vadd.f32 %v695, %v972
        %v1038 = vadd.f32 %v698, %v975
        %v1039 = vadd.f32 %v701, %v978
        %v1040 = vadd.f32 %v704, %v981
        %v1041 = vadd.f32 %v707, %v984
        %v1042 = vadd.f32 %v710, %v987
        %v1043 = vadd.f32 %v713, %v990
        %v1044 = vadd.f32 %v716, %v993
        %v1045 = vadd.f32 %v719, %v996
        %v1046 = vadd.f32 %v722, %v999
        %v1047 = vadd.f32 %v725, %v1002
        %v1048 = vadd.f32 %v728, %v1005
        %v1049 = vadd.f32 %v731, %v1008
        %v1050 = vadd.f32 %v734, %v1011
        %v1051 = vadd.f32 %v737, %v1014
        %v1052 = vld [vmem:[%s2] sm:$0x1]
        %v1054 = vperm.slane %v1052, 0
        %v1056 = vadd.f32 %v1016, %v1054
        %v1057 = vadd.f32 %v1017, %v1054
        %v1058 = vadd.f32 %v1018, %v1054
        %v1059 = vadd.f32 %v1019, %v1054
        %v1060 = vadd.f32 %v1020, %v1054
        %v1061 = vadd.f32 %v1021, %v1054
        %v1062 = vadd.f32 %v1022, %v1054
        %v1063 = vadd.f32 %v1023, %v1054
        %v1064 = vadd.f32 %v1024, %v1054
        %v1065 = vadd.f32 %v1025, %v1054
        %v1066 = vadd.f32 %v1026, %v1054
        %v1067 = vadd.f32 %v1027, %v1054
        %v1068 = vadd.f32 %v1028, %v1054
        %v1069 = vadd.f32 %v1029, %v1054
        %v1070 = vadd.f32 %v1030, %v1054
        %v1071 = vadd.f32 %v1031, %v1054
        %v1072 = vadd.f32 %v1032, %v1054
        %v1073 = vadd.f32 %v1033, %v1054
        %v1074 = vadd.f32 %v1034, %v1054
        %v1075 = vadd.f32 %v1035, %v1054
        %v1076 = vadd.f32 %v1036, %v1054
        %v1077 = vadd.f32 %v1037, %v1054
        %v1078 = vadd.f32 %v1038, %v1054
        %v1079 = vadd.f32 %v1039, %v1054
        %v1080 = vadd.f32 %v1040, %v1054
        %v1081 = vadd.f32 %v1041, %v1054
        %v1082 = vadd.f32 %v1042, %v1054
        %v1083 = vadd.f32 %v1043, %v1054
        %v1084 = vadd.f32 %v1044, %v1054
        %v1085 = vadd.f32 %v1045, %v1054
        %v1086 = vadd.f32 %v1046, %v1054
        %v1087 = vadd.f32 %v1047, %v1054
        %v1088 = vadd.f32 %v1048, %v1054
        %v1089 = vadd.f32 %v1049, %v1054
        %v1090 = vadd.f32 %v1050, %v1054
        %v1091 = vadd.f32 %v1051, %v1054
        %vm1092 = vcmp.ge.f32.partialorder %v1056, 0.0
        %vm1093 = vcmp.ge.f32.partialorder %v1057, 0.0
        %vm1094 = vcmp.ge.f32.partialorder %v1058, 0.0
        %vm1095 = vcmp.ge.f32.partialorder %v1059, 0.0
        %vm1096 = vcmp.ge.f32.partialorder %v1060, 0.0
        %vm1097 = vcmp.ge.f32.partialorder %v1061, 0.0
        %vm1098 = vcmp.ge.f32.partialorder %v1062, 0.0
        %vm1099 = vcmp.ge.f32.partialorder %v1063, 0.0
        %vm1100 = vcmp.ge.f32.partialorder %v1064, 0.0
        %vm1101 = vcmp.ge.f32.partialorder %v1065, 0.0
        %vm1102 = vcmp.ge.f32.partialorder %v1066, 0.0
        %vm1103 = vcmp.ge.f32.partialorder %v1067, 0.0
        %vm1104 = vcmp.ge.f32.partialorder %v1068, 0.0
        %vm1105 = vcmp.ge.f32.partialorder %v1069, 0.0
        %vm1106 = vcmp.ge.f32.partialorder %v1070, 0.0
        %vm1107 = vcmp.ge.f32.partialorder %v1071, 0.0
        %vm1108 = vcmp.ge.f32.partialorder %v1072, 0.0
        %vm1109 = vcmp.ge.f32.partialorder %v1073, 0.0
        %vm1110 = vcmp.ge.f32.partialorder %v1074, 0.0
        %vm1111 = vcmp.ge.f32.partialorder %v1075, 0.0
        %vm1112 = vcmp.ge.f32.partialorder %v1076, 0.0
        %vm1113 = vcmp.ge.f32.partialorder %v1077, 0.0
        %vm1114 = vcmp.ge.f32.partialorder %v1078, 0.0
        %vm1115 = vcmp.ge.f32.partialorder %v1079, 0.0
        %vm1116 = vcmp.ge.f32.partialorder %v1080, 0.0
        %vm1117 = vcmp.ge.f32.partialorder %v1081, 0.0
        %vm1118 = vcmp.ge.f32.partialorder %v1082, 0.0
        %vm1119 = vcmp.ge.f32.partialorder %v1083, 0.0
        %vm1120 = vcmp.ge.f32.partialorder %v1084, 0.0
        %vm1121 = vcmp.ge.f32.partialorder %v1085, 0.0
        %vm1122 = vcmp.ge.f32.partialorder %v1086, 0.0
        %vm1123 = vcmp.ge.f32.partialorder %v1087, 0.0
        %vm1124 = vcmp.ge.f32.partialorder %v1088, 0.0
        %vm1125 = vcmp.ge.f32.partialorder %v1089, 0.0
        %vm1126 = vcmp.ge.f32.partialorder %v1090, 0.0
        %vm1127 = vcmp.ge.f32.partialorder %v1091, 0.0
        %v1128 = vmul.f32 %v1056, 0.1
        %v1129 = vmul.f32 %v1057, 0.1
        %v1130 = vmul.f32 %v1058, 0.1
        %v1131 = vmul.f32 %v1059, 0.1
        %v1132 = vmul.f32 %v1060, 0.1
        %v1133 = vmul.f32 %v1061, 0.1
        %v1134 = vmul.f32 %v1062, 0.1
        %v1135 = vmul.f32 %v1063, 0.1
        %v1136 = vmul.f32 %v1064, 0.1
        %v1137 = vmul.f32 %v1065, 0.1
        %v1138 = vmul.f32 %v1066, 0.1
        %v1139 = vmul.f32 %v1067, 0.1
        %v1140 = vmul.f32 %v1068, 0.1
        %v1141 = vmul.f32 %v1069, 0.1
        %v1142 = vmul.f32 %v1070, 0.1
        %v1143 = vmul.f32 %v1071, 0.1
        %v1144 = vmul.f32 %v1072, 0.1
        %v1145 = vmul.f32 %v1073, 0.1
        %v1146 = vmul.f32 %v1074, 0.1
        %v1147 = vmul.f32 %v1075, 0.1
        %v1148 = vmul.f32 %v1076, 0.1
        %v1149 = vmul.f32 %v1077, 0.1
        %v1150 = vmul.f32 %v1078, 0.1
        %v1151 = vmul.f32 %v1079, 0.1
        %v1152 = vmul.f32 %v1080, 0.1
        %v1153 = vmul.f32 %v1081, 0.1
        %v1154 = vmul.f32 %v1082, 0.1
        %v1155 = vmul.f32 %v1083, 0.1
        %v1156 = vmul.f32 %v1084, 0.1
        %v1157 = vmul.f32 %v1085, 0.1
        %v1158 = vmul.f32 %v1086, 0.1
        %v1159 = vmul.f32 %v1087, 0.1
        %v1160 = vmul.f32 %v1088, 0.1
        %v1161 = vmul.f32 %v1089, 0.1
        %v1162 = vmul.f32 %v1090, 0.1
        %v1163 = vmul.f32 %v1091, 0.1
        %v1164 = vsel %vm1092, %v1056, %v1128
        %v1165 = vsel %vm1093, %v1057, %v1129
        %v1166 = vsel %vm1094, %v1058, %v1130
        %v1167 = vsel %vm1095, %v1059, %v1131
        %v1168 = vsel %vm1096, %v1060, %v1132
        %v1169 = vsel %vm1097, %v1061, %v1133
        %v1170 = vsel %vm1098, %v1062, %v1134
        %v1171 = vsel %vm1099, %v1063, %v1135
        %v1172 = vsel %vm1100, %v1064, %v1136
        %v1173 = vsel %vm1101, %v1065, %v1137
        %v1174 = vsel %vm1102, %v1066, %v1138
        %v1175 = vsel %vm1103, %v1067, %v1139
        %v1176 = vsel %vm1104, %v1068, %v1140
        %v1177 = vsel %vm1105, %v1069, %v1141
        %v1178 = vsel %vm1106, %v1070, %v1142
        %v1179 = vsel %vm1107, %v1071, %v1143
        %v1180 = vsel %vm1108, %v1072, %v1144
        %v1181 = vsel %vm1109, %v1073, %v1145
        %v1182 = vsel %vm1110, %v1074, %v1146
        %v1183 = vsel %vm1111, %v1075, %v1147
        %v1184 = vsel %vm1112, %v1076, %v1148
        %v1185 = vsel %vm1113, %v1077, %v1149
        %v1186 = vsel %vm1114, %v1078, %v1150
        %v1187 = vsel %vm1115, %v1079, %v1151
        %v1188 = vsel %vm1116, %v1080, %v1152
        %v1189 = vsel %vm1117, %v1081, %v1153
        %v1190 = vsel %vm1118, %v1082, %v1154
        %v1191 = vsel %vm1119, %v1083, %v1155
        %v1192 = vsel %vm1120, %v1084, %v1156
        %v1193 = vsel %vm1121, %v1085, %v1157
        %v1194 = vsel %vm1122, %v1086, %v1158
        %v1195 = vsel %vm1123, %v1087, %v1159
        %v1196 = vsel %vm1124, %v1088, %v1160
        %v1197 = vsel %vm1125, %v1089, %v1161
        %v1198 = vsel %vm1126, %v1090, %v1162
        %v1199 = vsel %vm1127, %v1091, %v1163
        %1200 = vst [vmem:[%s177] sm:$0xff] %v1164
        %1201 = vst [vmem:[%s177 + $0x8] sm:$0xff] %v1165
        %1202 = vst [vmem:[%s177 + $0x10] sm:$0xff] %v1166
        %1203 = vst [vmem:[%s177 + $0x18] sm:$0xff] %v1167
        %1204 = vst [vmem:[%s177 + $0x20] sm:$0xff] %v1168
        %1205 = vst [vmem:[%s177 + $0x28] sm:$0xff] %v1169
        %1206 = vst [vmem:[%s177 + $0x30] sm:$0xff] %v1170
        %1207 = vst [vmem:[%s177 + $0x38] sm:$0xff] %v1171
        %1208 = vst [vmem:[%s177 + $0x40] sm:$0xff] %v1172
        %1209 = vst [vmem:[%s177 + $0x48] sm:$0xff] %v1173
        %1210 = vst [vmem:[%s177 + $0x50] sm:$0xff] %v1174
        %1211 = vst [vmem:[%s177 + $0x58] sm:$0xff] %v1175
        %1212 = vst [vmem:[%s177 + $0x60] sm:$0xff] %v1176
        %1213 = vst [vmem:[%s177 + $0x68] sm:$0xff] %v1177
        %1214 = vst [vmem:[%s177 + $0x70] sm:$0xff] %v1178
        %1215 = vst [vmem:[%s177 + $0x78] sm:$0xff] %v1179
        %1216 = vst [vmem:[%s177 + $0x80] sm:$0xff] %v1180
        %1217 = vst [vmem:[%s177 + $0x88] sm:$0xff] %v1181
        %1218 = vst [vmem:[%s177 + $0x90] sm:$0xff] %v1182
        %1219 = vst [vmem:[%s177 + $0x98] sm:$0xff] %v1183
        %1220 = vst [vmem:[%s177 + $0xa0] sm:$0xff] %v1184
        %1221 = vst [vmem:[%s177 + $0xa8] sm:$0xff] %v1185
        %1222 = vst [vmem:[%s177 + $0xb0] sm:$0xff] %v1186
        %1223 = vst [vmem:[%s177 + $0xb8] sm:$0xff] %v1187
        %1224 = vst [vmem:[%s177 + $0xc0] sm:$0xff] %v1188
        %1225 = vst [vmem:[%s177 + $0xc8] sm:$0xff] %v1189
        %1226 = vst [vmem:[%s177 + $0xd0] sm:$0xff] %v1190
        %1227 = vst [vmem:[%s177 + $0xd8] sm:$0xff] %v1191
        %1228 = vst [vmem:[%s177 + $0xe0] sm:$0xff] %v1192
        %1229 = vst [vmem:[%s177 + $0xe8] sm:$0xff] %v1193
        %1230 = vst [vmem:[%s177 + $0xf0] sm:$0xff] %v1194
        %1231 = vst [vmem:[%s177 + $0xf8] sm:$0xff] %v1195
        %1232 = vst [vmem:[%s177 + $0x100] sm:$0xff] %v1196
        %1233 = vst [vmem:[%s177 + $0x108] sm:$0xff] %v1197
        %1234 = vst [vmem:[%s177 + $0x110] sm:$0xff] %v1198
        %1235 = vst [vmem:[%s177 + $0x118] sm:$0xff] %v1199
        %s1236 = sand.u32 %s107, 1
        %s1237 = scalar_lea.sflag [#allocation3], %s1236
        %s1238 = sand.u32 %s107, 1
        %s1239 = smul.addr %s1238, 288
        %s1240 = scalar_lea.vmem [#allocation2], %s1239
        // Predicated region
        $region33: #{tpu_custom_call.1} parent=31 // pred_check
          %p1241 = pneg %p117
        $region34: #{tpu_custom_call.1} parent=31 // pred_check_branch
          %1243 = sbr.rel (%p1241) target = $region36
        $region35: #{tpu_custom_call.1} parent=31 // pred_region
          %s1244 = smul.u32 36, %s22
          %1246 = vsyncadd %s1237, 0
          %s1247 = smul.addr %s21, 36
          %s1248 = sadd.s32 %s1244, %s1247
          %s1249 = smul.addr %s1248, 8
          %s1250 = scalar_lea.hbm %s3, %s1249
          %s1251 = sshll.u32 %s1240, 4
          %s1252 = int_to_ptr.vmem [resolvable:$true] %s1251
          %s1253 = sshll.u32 %s1250, 4
          %s1254 = int_to_ptr.hbm [resolvable:$true] %s1253
          %1259 = dma.vmem_to_hbm [thread:$0]  %s1252, 4608, %s1254, %s1237, 128, 128, 8
        $region36: #{tpu_custom_call.1} parent=31 // pred_fallthru
          _
      $region32: #{tpu_custom_call.1} parent=5 // pred_fallthru
        _
      %p1260 = scmp.le.s32.totalorder 2, %s12
      // Predicated region
      $region37: #{tpu_custom_call.1} parent=5 // pred_check
        %p1261 = pneg %p1260
      $region38: #{tpu_custom_call.1} parent=5 // pred_check_branch
        %1263 = sbr.rel (%p1261) target = $region40
      $region39: #{tpu_custom_call.1} parent=5 // pred_region
        %s1264 = ssub.s32 %s12, 2
        // Predicated region
        $region41: #{tpu_custom_call.1} parent=39 // pred_check
          %p1265 = pneg %p123
        $region42: #{tpu_custom_call.1} parent=39 // pred_check_branch
          %1267 = sbr.rel (%p1265) target = $region44
        $region43: #{tpu_custom_call.1} parent=39 // pred_region
          %s1268 = sand.u32 %s108, 1
          %s1269 = scalar_lea.sflag [#allocation3], %s1268
          %s1270 = sand.u32 %s108, 1
          %s1271 = smul.addr %s1270, 288
          %s1272 = scalar_lea.vmem [#allocation2], %s1271
          %1274 = dma.done %s1269, 4608
        $region44: #{tpu_custom_call.1} parent=39 // pred_fallthru
          _
      $region40: #{tpu_custom_call.1} parent=5 // pred_fallthru
        _
    $region6: #{tpu_custom_call.1} parent=1 // loop_footer
      %s16 = sadd.s32 1, %s12
    $region7: #{tpu_custom_call.1} parent=1 // loop_footer_branch
      %11 = sbr.rel target = $region3
    $region8: #{tpu_custom_call.1} parent=1 // loop_exit
      _
    %1275 = vsyncpa [#allocation3], 1
    %s1276 = scalar_lea.sflag [#allocation3], 1
    %1277 = vsyncpa %s1276, 1

</llo_original>
